<compile_context>
chip_gen: v5e
topology: v5e:2x2
jax: 0.10.0
libtpu: 0.0.40
codegen_flags: <defaults>
</compile_context>

<pallas_src>
import jax
import jax.numpy as jnp
from jax.experimental import pallas as pl
from jax.experimental.pallas import tpu as pltpu

LANE = 128         # vreg lane width
SUBLANE = 8        # vreg sublane count (f32)
VPU_L1_MAX_K = 16  # below this contraction depth, layer 1 runs on the VPU


def _round_up(n: int, m: int) -> int:
    return (n + m - 1) // m * m


def shared_network_kernel(x_ref, w1_ref, b1_ref, w2_ref, b2_ref, o_ref):
    """Fused 2-layer MLP with ReLU, one batch tile per grid step.

    x_ref:  (TB, obs)   f32 (cast to compute dtype inside the kernel)
    w1_ref: (obs, Hp)   f32/bf16  (transposed + lane-padded PyTorch weight)
    b1_ref: (1, Hp)     f32       (zero-padded)
    w2_ref: (Hp, Hp)    f32/bf16  (transposed + padded)
    b2_ref: (1, Hp)     f32       (zero-padded)
    o_ref:  (TB, Hp)    f32 (or bf16 when out_dtype=bf16)
    """
    obs = x_ref.shape[-1]

    if obs <= VPU_L1_MAX_K:
        # Layer 1 on the VPU: obs broadcast FMAs per output vreg.  A K=obs
        # matmul would use a few % of the MXU contraction depth yet pay the
        # full push/drain latency; the VALU slots overlap with layer 2's
        # vmatmul pushes instead.  f32 math (v5e has no bf16 VPU path).
        x = x_ref[...].astype(jnp.float32)
        w1 = w1_ref[...].astype(jnp.float32)
        h = b1_ref[...].astype(jnp.float32)          # (1, Hp), broadcasts
        for k in range(obs):                         # static, tiny unroll
            h = h + x[:, k:k + 1] * w1[k:k + 1, :]
    else:
        h = jnp.dot(x_ref[...].astype(w1_ref.dtype), w1_ref[...],
                    preferred_element_type=jnp.float32) + b1_ref[...]
    h = jnp.maximum(h, 0.0)

    # Layer 2 on the MXU: bf16 operands (when enabled), f32 accumulation,
    # f32 bias add + ReLU.
    y = jnp.dot(h.astype(w2_ref.dtype), w2_ref[...],
                preferred_element_type=jnp.float32) + b2_ref[...]
    y = jnp.maximum(y, 0.0)

    # TODO(synk): fuse the downstream actor/value head matmuls here (consume
    # y from VMEM, concat head weights along the lane dim to N=256) once the
    # full agent forward is ported; SharedNetwork alone has no heads.
    o_ref[...] = y.astype(o_ref.dtype)


def prepare_params(w1, b1, w2, b2, *, use_bf16: bool = True):
    """One-time parameter prep (hoisted out of the per-step forward).

    PyTorch nn.Linear layout in: w1 (H, obs), b1 (H,), w2 (H, H), b2 (H,).
    Returns transposed, lane-padded (H -> Hp=128k) and (by default) bf16-cast
    parameters ready for the kernel.  Biases stay f32.
    """
    H, obs = w1.shape
    Hp = _round_up(H, LANE)
    cdt = jnp.bfloat16 if use_bf16 else jnp.float32

    w1_t = jnp.asarray(w1, jnp.float32).T            # (obs, H)
    w2_t = jnp.asarray(w2, jnp.float32).T            # (H, H)

    # Zero-padding keeps the extra lanes exactly zero through both layers
    # (relu(0 + 0) = 0), so slicing [:, :H] at the end is exact.  Any future
    # in-place weight update must preserve the zero pads.
    w1_p = jnp.zeros((obs, Hp), jnp.float32).at[:, :H].set(w1_t).astype(cdt)
    w2_p = jnp.zeros((Hp, Hp), jnp.float32).at[:H, :H].set(w2_t).astype(cdt)
    b1_p = jnp.zeros((1, Hp), jnp.float32).at[0, :H].set(jnp.asarray(b1, jnp.float32))
    b2_p = jnp.zeros((1, Hp), jnp.float32).at[0, :H].set(jnp.asarray(b2, jnp.float32))

    return dict(w1=w1_p, b1=b1_p, w2=w2_p, b2=b2_p,
                obs_size=obs, hidden_dim=H)


def shared_network_forward(x, params, *, num_batch_tiles: int = 1,
                           out_dtype=jnp.float32, return_padded: bool = False):
    """x: (B, obs_size) f32.  Returns (B, hidden_dim) out_dtype.

    num_batch_tiles: 1 on v5e/v6e (single TC -> extra grid steps are pure
    overhead); an even number (e.g. 2) on v7x with large B so the "parallel"
    batch axis shards across its two TensorCores.
    """
    B, obs = x.shape
    assert obs == params["obs_size"]
    H = params["hidden_dim"]
    Hp = params["w2"].shape[0]

    # Batch tile: multiple of 8 sublanes; pad B up so the grid divides evenly.
    TB = _round_up(pl.cdiv(B, num_batch_tiles), SUBLANE)
    Bp = TB * num_batch_tiles
    x_p = x if Bp == B else jnp.pad(x, ((0, Bp - B), (0, 0)))

    out = pl.pallas_call(
        shared_network_kernel,
        out_shape=jax.ShapeDtypeStruct((Bp, Hp), out_dtype),
        grid=(num_batch_tiles,),
        in_specs=[
            # x streams per batch tile; obs stays full-extent (tiny, input only).
            pl.BlockSpec((TB, obs), lambda i: (i, 0)),
            # Weights / biases: same block for every i -> DMA'd once, VMEM-resident.
            pl.BlockSpec((obs, Hp), lambda i: (0, 0)),
            pl.BlockSpec((1, Hp), lambda i: (0, 0)),
            pl.BlockSpec((Hp, Hp), lambda i: (0, 0)),
            pl.BlockSpec((1, Hp), lambda i: (0, 0)),
        ],
        out_specs=pl.BlockSpec((TB, Hp), lambda i: (i, 0)),
        compiler_params=pltpu.CompilerParams(
            # Batch tiles are independent -> shardable across v7x's two TCs.
            dimension_semantics=("parallel",),
        ),
    )(x_p, params["w1"], params["b1"], params["w2"], params["b2"])

    if return_padded:
        return out            # (Bp, Hp): for fused downstream consumers
    return out[:B, :H]


def reference_forward(x, w1, b1, w2, b2):
    """Pure-JAX reference matching PyTorch: relu(relu(x W1^T + b1) W2^T + b2)."""
    h = jnp.maximum(x @ w1.T + b1, 0.0)
    return jnp.maximum(h @ w2.T + b2, 0.0)


if __name__ == "__main__":
    # CartPole SharedNetwork shapes: obs_size=4, hidden_dim=32.
    # Batch = 256 vectorized environments; num_batch_tiles=1 -> grid=(1,),
    # the whole batch in one grid step (the v5e/v6e-optimal choice).
    obs_size, hidden_dim, batch = 4, 32, 256

    key = jax.random.PRNGKey(0)
    kx, k1, k2, k3, k4 = jax.random.split(key, 5)

    x = jax.random.normal(kx, (batch, obs_size), dtype=jnp.float32)

    # PyTorch nn.Linear-shaped synthetic parameters (W is (out, in)).
    bound1 = 1.0 / jnp.sqrt(obs_size)
    bound2 = 1.0 / jnp.sqrt(hidden_dim)
    w1 = jax.random.uniform(k1, (hidden_dim, obs_size), jnp.float32, -bound1, bound1)
    b1 = jax.random.uniform(k2, (hidden_dim,), jnp.float32, -bound1, bound1)
    w2 = jax.random.uniform(k3, (hidden_dim, hidden_dim), jnp.float32, -bound2, bound2)
    b2 = jax.random.uniform(k4, (hidden_dim,), jnp.float32, -bound2, bound2)

    ref = reference_forward(x, w1, b1, w2, b2)

    # Default path: bf16 MXU operands, f32 accumulation.  Whole forward under
    # jit so the (rare) pad and the trailing slice fuse with the kernel call.
    params = prepare_params(w1, b1, w2, b2)                      # use_bf16=True
    fwd = jax.jit(lambda xx: shared_network_forward(xx, params))
    out = jax.block_until_ready(fwd(x))
    assert out.shape == (batch, hidden_dim)
    assert jnp.allclose(out, ref, atol=1e-1, rtol=5e-2), "bf16 Pallas output mismatch"

    # f32 path: tolerance-level parity with the PyTorch f32 module.
    params_f32 = prepare_params(w1, b1, w2, b2, use_bf16=False)
    fwd_f32 = jax.jit(lambda xx: shared_network_forward(xx, params_f32))
    out_f32 = jax.block_until_ready(fwd_f32(x))
    assert out_f32.shape == (batch, hidden_dim)
    assert jnp.allclose(out_f32, ref, atol=1e-5, rtol=1e-5), "f32 Pallas output mismatch"

    print("KERNEL_OK")
</pallas_src>

<mosaic_0001>
module attributes {stable_mosaic.version = 11 : i64} {
  func.func @shared_network_kernel(%arg0: i32, %arg1: memref<256x4xf32, #tpu.memory_space<vmem>>, %arg2: memref<4x128xbf16, #tpu.memory_space<vmem>>, %arg3: memref<1x128xf32, #tpu.memory_space<vmem>>, %arg4: memref<128x128xbf16, #tpu.memory_space<vmem>>, %arg5: memref<1x128xf32, #tpu.memory_space<vmem>>, %arg6: memref<256x128xf32, #tpu.memory_space<vmem>>) attributes {dimension_semantics = [#tpu.dimension_semantics<parallel>], iteration_bounds = array<i64: 1>, scalar_prefetch = 0 : i64, scratch_operands = 0 : i64, tpu.core_type = #tpu.core_type<tc>, window_params = [{transform_indices = @transform_0, window_bounds = array<i64: 256, 4>}, {pipeline_mode = #tpu.pipeline_mode<synchronous>, transform_indices = @transform_1, window_bounds = array<i64: 4, 128>}, {pipeline_mode = #tpu.pipeline_mode<synchronous>, transform_indices = @transform_2, window_bounds = array<i64: 1, 128>}, {pipeline_mode = #tpu.pipeline_mode<synchronous>, transform_indices = @transform_3, window_bounds = array<i64: 128, 128>}, {pipeline_mode = #tpu.pipeline_mode<synchronous>, transform_indices = @transform_4, window_bounds = array<i64: 1, 128>}, {transform_indices = @transform_5, window_bounds = array<i64: 256, 128>}]} {
    %c0 = arith.constant 0 : index
    %c0_0 = arith.constant 0 : index
    %0 = vector.load %arg1[%c0, %c0_0] : memref<256x4xf32, #tpu.memory_space<vmem>>, vector<256x4xf32>
    %c0_1 = arith.constant 0 : index
    %c0_2 = arith.constant 0 : index
    %1 = vector.load %arg2[%c0_1, %c0_2] : memref<4x128xbf16, #tpu.memory_space<vmem>>, vector<4x128xbf16>
    %2 = arith.extf %1 : vector<4x128xbf16> to vector<4x128xf32>
    %c0_3 = arith.constant 0 : index
    %c0_4 = arith.constant 0 : index
    %3 = vector.load %arg3[%c0_3, %c0_4] : memref<1x128xf32, #tpu.memory_space<vmem>>, vector<1x128xf32>
    %4 = vector.extract_strided_slice %0 {offsets = [0, 0], sizes = [256, 1], strides = [1, 1]} : vector<256x4xf32> to vector<256x1xf32>
    %5 = vector.extract_strided_slice %2 {offsets = [0, 0], sizes = [1, 128], strides = [1, 1]} : vector<4x128xf32> to vector<1x128xf32>
    %6 = vector.broadcast %4 : vector<256x1xf32> to vector<256x128xf32>
    %7 = vector.broadcast %5 : vector<1x128xf32> to vector<256x128xf32>
    %8 = arith.mulf %6, %7 : vector<256x128xf32>
    %9 = vector.broadcast %3 : vector<1x128xf32> to vector<256x128xf32>
    %10 = arith.addf %9, %8 : vector<256x128xf32>
    %11 = vector.extract_strided_slice %0 {offsets = [0, 1], sizes = [256, 1], strides = [1, 1]} : vector<256x4xf32> to vector<256x1xf32>
    %12 = vector.extract_strided_slice %2 {offsets = [1, 0], sizes = [1, 128], strides = [1, 1]} : vector<4x128xf32> to vector<1x128xf32>
    %13 = vector.broadcast %11 : vector<256x1xf32> to vector<256x128xf32>
    %14 = vector.broadcast %12 : vector<1x128xf32> to vector<256x128xf32>
    %15 = arith.mulf %13, %14 : vector<256x128xf32>
    %16 = arith.addf %10, %15 : vector<256x128xf32>
    %17 = vector.extract_strided_slice %0 {offsets = [0, 2], sizes = [256, 1], strides = [1, 1]} : vector<256x4xf32> to vector<256x1xf32>
    %18 = vector.extract_strided_slice %2 {offsets = [2, 0], sizes = [1, 128], strides = [1, 1]} : vector<4x128xf32> to vector<1x128xf32>
    %19 = vector.broadcast %17 : vector<256x1xf32> to vector<256x128xf32>
    %20 = vector.broadcast %18 : vector<1x128xf32> to vector<256x128xf32>
    %21 = arith.mulf %19, %20 : vector<256x128xf32>
    %22 = arith.addf %16, %21 : vector<256x128xf32>
    %23 = vector.extract_strided_slice %0 {offsets = [0, 3], sizes = [256, 1], strides = [1, 1]} : vector<256x4xf32> to vector<256x1xf32>
    %24 = vector.extract_strided_slice %2 {offsets = [3, 0], sizes = [1, 128], strides = [1, 1]} : vector<4x128xf32> to vector<1x128xf32>
    %25 = vector.broadcast %23 : vector<256x1xf32> to vector<256x128xf32>
    %26 = vector.broadcast %24 : vector<1x128xf32> to vector<256x128xf32>
    %27 = arith.mulf %25, %26 : vector<256x128xf32>
    %28 = arith.addf %22, %27 : vector<256x128xf32>
    %cst = arith.constant 0.000000e+00 : f32
    %29 = vector.broadcast %cst : f32 to vector<256x128xf32>
    %30 = arith.maximumf %28, %29 : vector<256x128xf32>
    %31 = arith.truncf %30 : vector<256x128xf32> to vector<256x128xbf16>
    %c0_5 = arith.constant 0 : index
    %c0_6 = arith.constant 0 : index
    %32 = vector.load %arg4[%c0_5, %c0_6] : memref<128x128xbf16, #tpu.memory_space<vmem>>, vector<128x128xbf16>
    %cst_7 = arith.constant dense<0.000000e+00> : vector<256x128xf32>
    %33 = tpu.matmul %31, %32, %cst_7 {dimension_numbers = #tpu.dot_dimension_numbers<[1], [0], [0], [1], [0, 0, 1, 1], [], []>} : vector<256x128xbf16>, vector<128x128xbf16>, vector<256x128xf32> -> vector<256x128xf32>
    %c0_8 = arith.constant 0 : index
    %c0_9 = arith.constant 0 : index
    %34 = vector.load %arg5[%c0_8, %c0_9] : memref<1x128xf32, #tpu.memory_space<vmem>>, vector<1x128xf32>
    %35 = vector.broadcast %34 : vector<1x128xf32> to vector<256x128xf32>
    %36 = arith.addf %33, %35 : vector<256x128xf32>
    %cst_10 = arith.constant 0.000000e+00 : f32
    %37 = vector.broadcast %cst_10 : f32 to vector<256x128xf32>
    %38 = arith.maximumf %36, %37 : vector<256x128xf32>
    %c0_11 = arith.constant 0 : index
    %c0_12 = arith.constant 0 : index
    %39 = vector.load %arg6[%c0_11, %c0_12] : memref<256x128xf32, #tpu.memory_space<vmem>>, vector<256x128xf32>
    tpu.vector_store %arg6[%c0_11, %c0_12], %38 {strides = array<i32>} : memref<256x128xf32, #tpu.memory_space<vmem>>, vector<256x128xf32>,
    return
  }
  func.func @transform_0(%arg0: i32) -> (i32, i32) {
    %c0_i32 = arith.constant 0 : i32
    %c0_i32_0 = arith.constant 0 : i32
    return %arg0, %c0_i32 : i32, i32
  }
  func.func @transform_1(%arg0: i32) -> (i32, i32) {
    %c0_i32 = arith.constant 0 : i32
    %c0_i32_0 = arith.constant 0 : i32
    %c0_i32_1 = arith.constant 0 : i32
    return %c0_i32, %c0_i32_0 : i32, i32
  }
  func.func @transform_2(%arg0: i32) -> (i32, i32) {
    %c0_i32 = arith.constant 0 : i32
    %c0_i32_0 = arith.constant 0 : i32
    %c0_i32_1 = arith.constant 0 : i32
    return %c0_i32, %c0_i32_0 : i32, i32
  }
  func.func @transform_3(%arg0: i32) -> (i32, i32) {
    %c0_i32 = arith.constant 0 : i32
    %c0_i32_0 = arith.constant 0 : i32
    %c0_i32_1 = arith.constant 0 : i32
    return %c0_i32, %c0_i32_0 : i32, i32
  }
  func.func @transform_4(%arg0: i32) -> (i32, i32) {
    %c0_i32 = arith.constant 0 : i32
    %c0_i32_0 = arith.constant 0 : i32
    %c0_i32_1 = arith.constant 0 : i32
    return %c0_i32, %c0_i32_0 : i32, i32
  }
  func.func @transform_5(%arg0: i32) -> (i32, i32) {
    %c0_i32 = arith.constant 0 : i32
    %c0_i32_0 = arith.constant 0 : i32
    return %arg0, %c0_i32 : i32, i32
  }
}

</mosaic_0001>

<llo_original>
// kernel: _lambda_.1
$region0: #{_lambda_.1}
  #allocation0 [shape = 'u32[]', space=smem, size = 0x4, offset = 0x4, fixed_abs, tag = 'smem constant byte address 0x4 - core index']
  #allocation1 [shape = 'u32[72,128]{1,0:T(1,128)}', space=vmem, size = 0x9000, scoped, tag = 'internal scratch']
  %s0 = inlined_call_operand.vmem [shape: f32[256,4], index: 0, kind: input, shape index: {}]
  %s1 = inlined_call_operand.vmem [shape: bf16[4,128], index: 1, kind: input, shape index: {}]
  %s2 = inlined_call_operand.vmem [shape: f32[1,128], index: 2, kind: input, shape index: {}]
  %s3 = inlined_call_operand.vmem [shape: bf16[128,128], index: 3, kind: input, shape index: {}]
  %s4 = inlined_call_operand.vmem [shape: f32[1,128], index: 4, kind: input, shape index: {}]
  %s5 = inlined_call_operand.vmem [shape: f32[256,128], index: 5, kind: output, shape index: {}]
  %s6 = sld [smem:[#allocation0]]
  $region30: #{_lambda_.1} parent=0
    _
  %s8 = ssub.s32 1, %s6
  %s9 = scalar_select 0, %s8, %s6
  // Predicated region
  $region2: #{_lambda_.1} parent=0 // pred_check
    _
  $region3: #{_lambda_.1} parent=0 // pred_check_branch
    %11 = sbr.rel (0) target = $region5
  $region4: #{_lambda_.1} parent=0 // pred_region
    _
  $region5: #{_lambda_.1} parent=0 // pred_fallthru
    _
  // Predicated region
  $region6: #{_lambda_.1} parent=0 // pred_check
    _
  $region7: #{_lambda_.1} parent=0 // pred_check_branch
    %13 = sbr.rel (0) target = $region9
  $region8: #{_lambda_.1} parent=0 // pred_region
    _
  $region9: #{_lambda_.1} parent=0 // pred_fallthru
    _
  // Predicated region
  $region10: #{_lambda_.1} parent=0 // pred_check
    _
  $region11: #{_lambda_.1} parent=0 // pred_check_branch
    %15 = sbr.rel (0) target = $region13
  $region12: #{_lambda_.1} parent=0 // pred_region
    _
  $region13: #{_lambda_.1} parent=0 // pred_fallthru
    _
  // Predicated region
  $region14: #{_lambda_.1} parent=0 // pred_check
    _
  $region15: #{_lambda_.1} parent=0 // pred_check_branch
    %17 = sbr.rel (0) target = $region17
  $region16: #{_lambda_.1} parent=0 // pred_region
    _
  $region17: #{_lambda_.1} parent=0 // pred_fallthru
    _
  // Predicated region
  $region18: #{_lambda_.1} parent=0 // pred_check
    _
  $region19: #{_lambda_.1} parent=0 // pred_check_branch
    %19 = sbr.rel (0) target = $region21
  $region20: #{_lambda_.1} parent=0 // pred_region
    _
  $region21: #{_lambda_.1} parent=0 // pred_fallthru
    _
  %v20 = vld [vmem:[%s0] sm:$0xff]
  %v21 = vld [vmem:[%s0 + $0x8] sm:$0xff]
  %v22 = vld [vmem:[%s0 + $0x10] sm:$0xff]
  %v23 = vld [vmem:[%s0 + $0x18] sm:$0xff]
  %v24 = vld [vmem:[%s0 + $0x20] sm:$0xff]
  %v25 = vld [vmem:[%s0 + $0x28] sm:$0xff]
  %v26 = vld [vmem:[%s0 + $0x30] sm:$0xff]
  %v27 = vld [vmem:[%s0 + $0x38] sm:$0xff]
  %v28 = vld [vmem:[%s0 + $0x40] sm:$0xff]
  %v29 = vld [vmem:[%s0 + $0x48] sm:$0xff]
  %v30 = vld [vmem:[%s0 + $0x50] sm:$0xff]
  %v31 = vld [vmem:[%s0 + $0x58] sm:$0xff]
  %v32 = vld [vmem:[%s0 + $0x60] sm:$0xff]
  %v33 = vld [vmem:[%s0 + $0x68] sm:$0xff]
  %v34 = vld [vmem:[%s0 + $0x70] sm:$0xff]
  %v35 = vld [vmem:[%s0 + $0x78] sm:$0xff]
  %v36 = vld [vmem:[%s0 + $0x80] sm:$0xff]
  %v37 = vld [vmem:[%s0 + $0x88] sm:$0xff]
  %v38 = vld [vmem:[%s0 + $0x90] sm:$0xff]
  %v39 = vld [vmem:[%s0 + $0x98] sm:$0xff]
  %v40 = vld [vmem:[%s0 + $0xa0] sm:$0xff]
  %v41 = vld [vmem:[%s0 + $0xa8] sm:$0xff]
  %v42 = vld [vmem:[%s0 + $0xb0] sm:$0xff]
  %v43 = vld [vmem:[%s0 + $0xb8] sm:$0xff]
  %v44 = vld [vmem:[%s0 + $0xc0] sm:$0xff]
  %v45 = vld [vmem:[%s0 + $0xc8] sm:$0xff]
  %v46 = vld [vmem:[%s0 + $0xd0] sm:$0xff]
  %v47 = vld [vmem:[%s0 + $0xd8] sm:$0xff]
  %v48 = vld [vmem:[%s0 + $0xe0] sm:$0xff]
  %v49 = vld [vmem:[%s0 + $0xe8] sm:$0xff]
  %v50 = vld [vmem:[%s0 + $0xf0] sm:$0xff]
  %v51 = vld [vmem:[%s0 + $0xf8] sm:$0xff]
  %v52 = vld [vmem:[%s1] sm:$0x3]
  %v53 = vunpack.c.l.bf16 %v52
  %v54 = vld [vmem:[%s2] sm:$0x1]
  %56 = vset.pattern.permute.xlu0 0
  %57 = vperm.xlu0 %56, %v20
  %v58 = vpop.permute.xlu0 %57
  %61 = vset.pattern.permute.xlu0 0
  %62 = vperm.xlu0 %61, %v21
  %v63 = vpop.permute.xlu0 %62
  %66 = vset.pattern.permute.xlu0 0
  %67 = vperm.xlu0 %66, %v22
  %v68 = vpop.permute.xlu0 %67
  %71 = vset.pattern.permute.xlu0 0
  %72 = vperm.xlu0 %71, %v23
  %v73 = vpop.permute.xlu0 %72
  %76 = vset.pattern.permute.xlu0 0
  %77 = vperm.xlu0 %76, %v24
  %v78 = vpop.permute.xlu0 %77
  %81 = vset.pattern.permute.xlu0 0
  %82 = vperm.xlu0 %81, %v25
  %v83 = vpop.permute.xlu0 %82
  %86 = vset.pattern.permute.xlu0 0
  %87 = vperm.xlu0 %86, %v26
  %v88 = vpop.permute.xlu0 %87
  %91 = vset.pattern.permute.xlu0 0
  %92 = vperm.xlu0 %91, %v27
  %v93 = vpop.permute.xlu0 %92
  %96 = vset.pattern.permute.xlu0 0
  %97 = vperm.xlu0 %96, %v28
  %v98 = vpop.permute.xlu0 %97
  %101 = vset.pattern.permute.xlu0 0
  %102 = vperm.xlu0 %101, %v29
  %v103 = vpop.permute.xlu0 %102
  %106 = vset.pattern.permute.xlu0 0
  %107 = vperm.xlu0 %106, %v30
  %v108 = vpop.permute.xlu0 %107
  %111 = vset.pattern.permute.xlu0 0
  %112 = vperm.xlu0 %111, %v31
  %v113 = vpop.permute.xlu0 %112
  %116 = vset.pattern.permute.xlu0 0
  %117 = vperm.xlu0 %116, %v32
  %v118 = vpop.permute.xlu0 %117
  %121 = vset.pattern.permute.xlu0 0
  %122 = vperm.xlu0 %121, %v33
  %v123 = vpop.permute.xlu0 %122
  %126 = vset.pattern.permute.xlu0 0
  %127 = vperm.xlu0 %126, %v34
  %v128 = vpop.permute.xlu0 %127
  %131 = vset.pattern.permute.xlu0 0
  %132 = vperm.xlu0 %131, %v35
  %v133 = vpop.permute.xlu0 %132
  %136 = vset.pattern.permute.xlu0 0
  %137 = vperm.xlu0 %136, %v36
  %v138 = vpop.permute.xlu0 %137
  %141 = vset.pattern.permute.xlu0 0
  %142 = vperm.xlu0 %141, %v37
  %v143 = vpop.permute.xlu0 %142
  %146 = vset.pattern.permute.xlu0 0
  %147 = vperm.xlu0 %146, %v38
  %v148 = vpop.permute.xlu0 %147
  %151 = vset.pattern.permute.xlu0 0
  %152 = vperm.xlu0 %151, %v39
  %v153 = vpop.permute.xlu0 %152
  %156 = vset.pattern.permute.xlu0 0
  %157 = vperm.xlu0 %156, %v40
  %v158 = vpop.permute.xlu0 %157
  %161 = vset.pattern.permute.xlu0 0
  %162 = vperm.xlu0 %161, %v41
  %v163 = vpop.permute.xlu0 %162
  %166 = vset.pattern.permute.xlu0 0
  %167 = vperm.xlu0 %166, %v42
  %v168 = vpop.permute.xlu0 %167
  %171 = vset.pattern.permute.xlu0 0
  %172 = vperm.xlu0 %171, %v43
  %v173 = vpop.permute.xlu0 %172
  %176 = vset.pattern.permute.xlu0 0
  %177 = vperm.xlu0 %176, %v44
  %v178 = vpop.permute.xlu0 %177
  %181 = vset.pattern.permute.xlu0 0
  %182 = vperm.xlu0 %181, %v45
  %v183 = vpop.permute.xlu0 %182
  %186 = vset.pattern.permute.xlu0 0
  %187 = vperm.xlu0 %186, %v46
  %v188 = vpop.permute.xlu0 %187
  %191 = vset.pattern.permute.xlu0 0
  %192 = vperm.xlu0 %191, %v47
  %v193 = vpop.permute.xlu0 %192
  %196 = vset.pattern.permute.xlu0 0
  %197 = vperm.xlu0 %196, %v48
  %v198 = vpop.permute.xlu0 %197
  %201 = vset.pattern.permute.xlu0 0
  %202 = vperm.xlu0 %201, %v49
  %v203 = vpop.permute.xlu0 %202
  %206 = vset.pattern.permute.xlu0 0
  %207 = vperm.xlu0 %206, %v50
  %v208 = vpop.permute.xlu0 %207
  %211 = vset.pattern.permute.xlu0 0
  %212 = vperm.xlu0 %211, %v51
  %v213 = vpop.permute.xlu0 %212
  %v215 = vperm.slane %v53, 0
  %v216 = vmul.f32 %v58, %v215
  %v217 = vmul.f32 %v63, %v215
  %v218 = vmul.f32 %v68, %v215
  %v219 = vmul.f32 %v73, %v215
  %v220 = vmul.f32 %v78, %v215
  %v221 = vmul.f32 %v83, %v215
  %v222 = vmul.f32 %v88, %v215
  %v223 = vmul.f32 %v93, %v215
  %v224 = vmul.f32 %v98, %v215
  %v225 = vmul.f32 %v103, %v215
  %v226 = vmul.f32 %v108, %v215
  %v227 = vmul.f32 %v113, %v215
  %v228 = vmul.f32 %v118, %v215
  %v229 = vmul.f32 %v123, %v215
  %v230 = vmul.f32 %v128, %v215
  %v231 = vmul.f32 %v133, %v215
  %v232 = vmul.f32 %v138, %v215
  %v233 = vmul.f32 %v143, %v215
  %v234 = vmul.f32 %v148, %v215
  %v235 = vmul.f32 %v153, %v215
  %v236 = vmul.f32 %v158, %v215
  %v237 = vmul.f32 %v163, %v215
  %v238 = vmul.f32 %v168, %v215
  %v239 = vmul.f32 %v173, %v215
  %v240 = vmul.f32 %v178, %v215
  %v241 = vmul.f32 %v183, %v215
  %v242 = vmul.f32 %v188, %v215
  %v243 = vmul.f32 %v193, %v215
  %v244 = vmul.f32 %v198, %v215
  %v245 = vmul.f32 %v203, %v215
  %v246 = vmul.f32 %v208, %v215
  %v247 = vmul.f32 %v213, %v215
  %v249 = vperm.slane %v54, 0
  %v251 = vadd.f32 %v249, %v216
  %v252 = vadd.f32 %v249, %v217
  %v253 = vadd.f32 %v249, %v218
  %v254 = vadd.f32 %v249, %v219
  %v255 = vadd.f32 %v249, %v220
  %v256 = vadd.f32 %v249, %v221
  %v257 = vadd.f32 %v249, %v222
  %v258 = vadd.f32 %v249, %v223
  %v259 = vadd.f32 %v249, %v224
  %v260 = vadd.f32 %v249, %v225
  %v261 = vadd.f32 %v249, %v226
  %v262 = vadd.f32 %v249, %v227
  %v263 = vadd.f32 %v249, %v228
  %v264 = vadd.f32 %v249, %v229
  %v265 = vadd.f32 %v249, %v230
  %v266 = vadd.f32 %v249, %v231
  %v267 = vadd.f32 %v249, %v232
  %v268 = vadd.f32 %v249, %v233
  %v269 = vadd.f32 %v249, %v234
  %v270 = vadd.f32 %v249, %v235
  %v271 = vadd.f32 %v249, %v236
  %v272 = vadd.f32 %v249, %v237
  %v273 = vadd.f32 %v249, %v238
  %v274 = vadd.f32 %v249, %v239
  %v275 = vadd.f32 %v249, %v240
  %v276 = vadd.f32 %v249, %v241
  %v277 = vadd.f32 %v249, %v242
  %v278 = vadd.f32 %v249, %v243
  %v279 = vadd.f32 %v249, %v244
  %v280 = vadd.f32 %v249, %v245
  %v281 = vadd.f32 %v249, %v246
  %v282 = vadd.f32 %v249, %v247
  %283 = vset.pattern.permute.xlu0 1
  %284 = vperm.xlu0 %283, %v20
  %v285 = vpop.permute.xlu0 %284
  %287 = vset.pattern.permute.xlu0 1
  %288 = vperm.xlu0 %287, %v21
  %v289 = vpop.permute.xlu0 %288
  %291 = vset.pattern.permute.xlu0 1
  %292 = vperm.xlu0 %291, %v22
  %v293 = vpop.permute.xlu0 %292
  %295 = vset.pattern.permute.xlu0 1
  %296 = vperm.xlu0 %295, %v23
  %v297 = vpop.permute.xlu0 %296
  %299 = vset.pattern.permute.xlu0 1
  %300 = vperm.xlu0 %299, %v24
  %v301 = vpop.permute.xlu0 %300
  %303 = vset.pattern.permute.xlu0 1
  %304 = vperm.xlu0 %303, %v25
  %v305 = vpop.permute.xlu0 %304
  %307 = vset.pattern.permute.xlu0 1
  %308 = vperm.xlu0 %307, %v26
  %v309 = vpop.permute.xlu0 %308
  %311 = vset.pattern.permute.xlu0 1
  %312 = vperm.xlu0 %311, %v27
  %v313 = vpop.permute.xlu0 %312
  %315 = vset.pattern.permute.xlu0 1
  %316 = vperm.xlu0 %315, %v28
  %v317 = vpop.permute.xlu0 %316
  %319 = vset.pattern.permute.xlu0 1
  %320 = vperm.xlu0 %319, %v29
  %v321 = vpop.permute.xlu0 %320
  %323 = vset.pattern.permute.xlu0 1
  %324 = vperm.xlu0 %323, %v30
  %v325 = vpop.permute.xlu0 %324
  %327 = vset.pattern.permute.xlu0 1
  %328 = vperm.xlu0 %327, %v31
  %v329 = vpop.permute.xlu0 %328
  %331 = vset.pattern.permute.xlu0 1
  %332 = vperm.xlu0 %331, %v32
  %v333 = vpop.permute.xlu0 %332
  %335 = vset.pattern.permute.xlu0 1
  %336 = vperm.xlu0 %335, %v33
  %v337 = vpop.permute.xlu0 %336
  %339 = vset.pattern.permute.xlu0 1
  %340 = vperm.xlu0 %339, %v34
  %v341 = vpop.permute.xlu0 %340
  %343 = vset.pattern.permute.xlu0 1
  %344 = vperm.xlu0 %343, %v35
  %v345 = vpop.permute.xlu0 %344
  %347 = vset.pattern.permute.xlu0 1
  %348 = vperm.xlu0 %347, %v36
  %v349 = vpop.permute.xlu0 %348
  %351 = vset.pattern.permute.xlu0 1
  %352 = vperm.xlu0 %351, %v37
  %v353 = vpop.permute.xlu0 %352
  %355 = vset.pattern.permute.xlu0 1
  %356 = vperm.xlu0 %355, %v38
  %v357 = vpop.permute.xlu0 %356
  %359 = vset.pattern.permute.xlu0 1
  %360 = vperm.xlu0 %359, %v39
  %v361 = vpop.permute.xlu0 %360
  %363 = vset.pattern.permute.xlu0 1
  %364 = vperm.xlu0 %363, %v40
  %v365 = vpop.permute.xlu0 %364
  %367 = vset.pattern.permute.xlu0 1
  %368 = vperm.xlu0 %367, %v41
  %v369 = vpop.permute.xlu0 %368
  %371 = vset.pattern.permute.xlu0 1
  %372 = vperm.xlu0 %371, %v42
  %v373 = vpop.permute.xlu0 %372
  %375 = vset.pattern.permute.xlu0 1
  %376 = vperm.xlu0 %375, %v43
  %v377 = vpop.permute.xlu0 %376
  %379 = vset.pattern.permute.xlu0 1
  %380 = vperm.xlu0 %379, %v44
  %v381 = vpop.permute.xlu0 %380
  %383 = vset.pattern.permute.xlu0 1
  %384 = vperm.xlu0 %383, %v45
  %v385 = vpop.permute.xlu0 %384
  %387 = vset.pattern.permute.xlu0 1
  %388 = vperm.xlu0 %387, %v46
  %v389 = vpop.permute.xlu0 %388
  %391 = vset.pattern.permute.xlu0 1
  %392 = vperm.xlu0 %391, %v47
  %v393 = vpop.permute.xlu0 %392
  %395 = vset.pattern.permute.xlu0 1
  %396 = vperm.xlu0 %395, %v48
  %v397 = vpop.permute.xlu0 %396
  %399 = vset.pattern.permute.xlu0 1
  %400 = vperm.xlu0 %399, %v49
  %v401 = vpop.permute.xlu0 %400
  %403 = vset.pattern.permute.xlu0 1
  %404 = vperm.xlu0 %403, %v50
  %v405 = vpop.permute.xlu0 %404
  %407 = vset.pattern.permute.xlu0 1
  %408 = vperm.xlu0 %407, %v51
  %v409 = vpop.permute.xlu0 %408
  %v411 = vperm.slane %v53, 1
  %v412 = vmul.f32 %v285, %v411
  %v413 = vmul.f32 %v289, %v411
  %v414 = vmul.f32 %v293, %v411
  %v415 = vmul.f32 %v297, %v411
  %v416 = vmul.f32 %v301, %v411
  %v417 = vmul.f32 %v305, %v411
  %v418 = vmul.f32 %v309, %v411
  %v419 = vmul.f32 %v313, %v411
  %v420 = vmul.f32 %v317, %v411
  %v421 = vmul.f32 %v321, %v411
  %v422 = vmul.f32 %v325, %v411
  %v423 = vmul.f32 %v329, %v411
  %v424 = vmul.f32 %v333, %v411
  %v425 = vmul.f32 %v337, %v411
  %v426 = vmul.f32 %v341, %v411
  %v427 = vmul.f32 %v345, %v411
  %v428 = vmul.f32 %v349, %v411
  %v429 = vmul.f32 %v353, %v411
  %v430 = vmul.f32 %v357, %v411
  %v431 = vmul.f32 %v361, %v411
  %v432 = vmul.f32 %v365, %v411
  %v433 = vmul.f32 %v369, %v411
  %v434 = vmul.f32 %v373, %v411
  %v435 = vmul.f32 %v377, %v411
  %v436 = vmul.f32 %v381, %v411
  %v437 = vmul.f32 %v385, %v411
  %v438 = vmul.f32 %v389, %v411
  %v439 = vmul.f32 %v393, %v411
  %v440 = vmul.f32 %v397, %v411
  %v441 = vmul.f32 %v401, %v411
  %v442 = vmul.f32 %v405, %v411
  %v443 = vmul.f32 %v409, %v411
  %v444 = vadd.f32 %v251, %v412
  %v445 = vadd.f32 %v252, %v413
  %v446 = vadd.f32 %v253, %v414
  %v447 = vadd.f32 %v254, %v415
  %v448 = vadd.f32 %v255, %v416
  %v449 = vadd.f32 %v256, %v417
  %v450 = vadd.f32 %v257, %v418
  %v451 = vadd.f32 %v258, %v419
  %v452 = vadd.f32 %v259, %v420
  %v453 = vadd.f32 %v260, %v421
  %v454 = vadd.f32 %v261, %v422
  %v455 = vadd.f32 %v262, %v423
  %v456 = vadd.f32 %v263, %v424
  %v457 = vadd.f32 %v264, %v425
  %v458 = vadd.f32 %v265, %v426
  %v459 = vadd.f32 %v266, %v427
  %v460 = vadd.f32 %v267, %v428
  %v461 = vadd.f32 %v268, %v429
  %v462 = vadd.f32 %v269, %v430
  %v463 = vadd.f32 %v270, %v431
  %v464 = vadd.f32 %v271, %v432
  %v465 = vadd.f32 %v272, %v433
  %v466 = vadd.f32 %v273, %v434
  %v467 = vadd.f32 %v274, %v435
  %v468 = vadd.f32 %v275, %v436
  %v469 = vadd.f32 %v276, %v437
  %v470 = vadd.f32 %v277, %v438
  %v471 = vadd.f32 %v278, %v439
  %v472 = vadd.f32 %v279, %v440
  %v473 = vadd.f32 %v280, %v441
  %v474 = vadd.f32 %v281, %v442
  %v475 = vadd.f32 %v282, %v443
  %476 = vset.pattern.permute.xlu0 2
  %477 = vperm.xlu0 %476, %v20
  %v478 = vpop.permute.xlu0 %477
  %480 = vset.pattern.permute.xlu0 2
  %481 = vperm.xlu0 %480, %v21
  %v482 = vpop.permute.xlu0 %481
  %484 = vset.pattern.permute.xlu0 2
  %485 = vperm.xlu0 %484, %v22
  %v486 = vpop.permute.xlu0 %485
  %488 = vset.pattern.permute.xlu0 2
  %489 = vperm.xlu0 %488, %v23
  %v490 = vpop.permute.xlu0 %489
  %492 = vset.pattern.permute.xlu0 2
  %493 = vperm.xlu0 %492, %v24
  %v494 = vpop.permute.xlu0 %493
  %496 = vset.pattern.permute.xlu0 2
  %497 = vperm.xlu0 %496, %v25
  %v498 = vpop.permute.xlu0 %497
  %500 = vset.pattern.permute.xlu0 2
  %501 = vperm.xlu0 %500, %v26
  %v502 = vpop.permute.xlu0 %501
  %504 = vset.pattern.permute.xlu0 2
  %505 = vperm.xlu0 %504, %v27
  %v506 = vpop.permute.xlu0 %505
  %508 = vset.pattern.permute.xlu0 2
  %509 = vperm.xlu0 %508, %v28
  %v510 = vpop.permute.xlu0 %509
  %512 = vset.pattern.permute.xlu0 2
  %513 = vperm.xlu0 %512, %v29
  %v514 = vpop.permute.xlu0 %513
  %516 = vset.pattern.permute.xlu0 2
  %517 = vperm.xlu0 %516, %v30
  %v518 = vpop.permute.xlu0 %517
  %520 = vset.pattern.permute.xlu0 2
  %521 = vperm.xlu0 %520, %v31
  %v522 = vpop.permute.xlu0 %521
  %524 = vset.pattern.permute.xlu0 2
  %525 = vperm.xlu0 %524, %v32
  %v526 = vpop.permute.xlu0 %525
  %528 = vset.pattern.permute.xlu0 2
  %529 = vperm.xlu0 %528, %v33
  %v530 = vpop.permute.xlu0 %529
  %532 = vset.pattern.permute.xlu0 2
  %533 = vperm.xlu0 %532, %v34
  %v534 = vpop.permute.xlu0 %533
  %536 = vset.pattern.permute.xlu0 2
  %537 = vperm.xlu0 %536, %v35
  %v538 = vpop.permute.xlu0 %537
  %540 = vset.pattern.permute.xlu0 2
  %541 = vperm.xlu0 %540, %v36
  %v542 = vpop.permute.xlu0 %541
  %544 = vset.pattern.permute.xlu0 2
  %545 = vperm.xlu0 %544, %v37
  %v546 = vpop.permute.xlu0 %545
  %548 = vset.pattern.permute.xlu0 2
  %549 = vperm.xlu0 %548, %v38
  %v550 = vpop.permute.xlu0 %549
  %552 = vset.pattern.permute.xlu0 2
  %553 = vperm.xlu0 %552, %v39
  %v554 = vpop.permute.xlu0 %553
  %556 = vset.pattern.permute.xlu0 2
  %557 = vperm.xlu0 %556, %v40
  %v558 = vpop.permute.xlu0 %557
  %560 = vset.pattern.permute.xlu0 2
  %561 = vperm.xlu0 %560, %v41
  %v562 = vpop.permute.xlu0 %561
  %564 = vset.pattern.permute.xlu0 2
  %565 = vperm.xlu0 %564, %v42
  %v566 = vpop.permute.xlu0 %565
  %568 = vset.pattern.permute.xlu0 2
  %569 = vperm.xlu0 %568, %v43
  %v570 = vpop.permute.xlu0 %569
  %572 = vset.pattern.permute.xlu0 2
  %573 = vperm.xlu0 %572, %v44
  %v574 = vpop.permute.xlu0 %573
  %576 = vset.pattern.permute.xlu0 2
  %577 = vperm.xlu0 %576, %v45
  %v578 = vpop.permute.xlu0 %577
  %580 = vset.pattern.permute.xlu0 2
  %581 = vperm.xlu0 %580, %v46
  %v582 = vpop.permute.xlu0 %581
  %584 = vset.pattern.permute.xlu0 2
  %585 = vperm.xlu0 %584, %v47
  %v586 = vpop.permute.xlu0 %585
  %588 = vset.pattern.permute.xlu0 2
  %589 = vperm.xlu0 %588, %v48
  %v590 = vpop.permute.xlu0 %589
  %592 = vset.pattern.permute.xlu0 2
  %593 = vperm.xlu0 %592, %v49
  %v594 = vpop.permute.xlu0 %593
  %596 = vset.pattern.permute.xlu0 2
  %597 = vperm.xlu0 %596, %v50
  %v598 = vpop.permute.xlu0 %597
  %600 = vset.pattern.permute.xlu0 2
  %601 = vperm.xlu0 %600, %v51
  %v602 = vpop.permute.xlu0 %601
  %v604 = vperm.slane %v53, 2
  %v605 = vmul.f32 %v478, %v604
  %v606 = vmul.f32 %v482, %v604
  %v607 = vmul.f32 %v486, %v604
  %v608 = vmul.f32 %v490, %v604
  %v609 = vmul.f32 %v494, %v604
  %v610 = vmul.f32 %v498, %v604
  %v611 = vmul.f32 %v502, %v604
  %v612 = vmul.f32 %v506, %v604
  %v613 = vmul.f32 %v510, %v604
  %v614 = vmul.f32 %v514, %v604
  %v615 = vmul.f32 %v518, %v604
  %v616 = vmul.f32 %v522, %v604
  %v617 = vmul.f32 %v526, %v604
  %v618 = vmul.f32 %v530, %v604
  %v619 = vmul.f32 %v534, %v604
  %v620 = vmul.f32 %v538, %v604
  %v621 = vmul.f32 %v542, %v604
  %v622 = vmul.f32 %v546, %v604
  %v623 = vmul.f32 %v550, %v604
  %v624 = vmul.f32 %v554, %v604
  %v625 = vmul.f32 %v558, %v604
  %v626 = vmul.f32 %v562, %v604
  %v627 = vmul.f32 %v566, %v604
  %v628 = vmul.f32 %v570, %v604
  %v629 = vmul.f32 %v574, %v604
  %v630 = vmul.f32 %v578, %v604
  %v631 = vmul.f32 %v582, %v604
  %v632 = vmul.f32 %v586, %v604
  %v633 = vmul.f32 %v590, %v604
  %v634 = vmul.f32 %v594, %v604
  %v635 = vmul.f32 %v598, %v604
  %v636 = vmul.f32 %v602, %v604
  %v637 = vadd.f32 %v444, %v605
  %v638 = vadd.f32 %v445, %v606
  %v639 = vadd.f32 %v446, %v607
  %v640 = vadd.f32 %v447, %v608
  %v641 = vadd.f32 %v448, %v609
  %v642 = vadd.f32 %v449, %v610
  %v643 = vadd.f32 %v450, %v611
  %v644 = vadd.f32 %v451, %v612
  %v645 = vadd.f32 %v452, %v613
  %v646 = vadd.f32 %v453, %v614
  %v647 = vadd.f32 %v454, %v615
  %v648 = vadd.f32 %v455, %v616
  %v649 = vadd.f32 %v456, %v617
  %v650 = vadd.f32 %v457, %v618
  %v651 = vadd.f32 %v458, %v619
  %v652 = vadd.f32 %v459, %v620
  %v653 = vadd.f32 %v460, %v621
  %v654 = vadd.f32 %v461, %v622
  %v655 = vadd.f32 %v462, %v623
  %v656 = vadd.f32 %v463, %v624
  %v657 = vadd.f32 %v464, %v625
  %v658 = vadd.f32 %v465, %v626
  %v659 = vadd.f32 %v466, %v627
  %v660 = vadd.f32 %v467, %v628
  %v661 = vadd.f32 %v468, %v629
  %v662 = vadd.f32 %v469, %v630
  %v663 = vadd.f32 %v470, %v631
  %v664 = vadd.f32 %v471, %v632
  %v665 = vadd.f32 %v472, %v633
  %v666 = vadd.f32 %v473, %v634
  %v667 = vadd.f32 %v474, %v635
  %v668 = vadd.f32 %v475, %v636
  %669 = vset.pattern.permute.xlu0 3
  %670 = vperm.xlu0 %669, %v20
  %v671 = vpop.permute.xlu0 %670
  %673 = vset.pattern.permute.xlu0 3
  %674 = vperm.xlu0 %673, %v21
  %v675 = vpop.permute.xlu0 %674
  %677 = vset.pattern.permute.xlu0 3
  %678 = vperm.xlu0 %677, %v22
  %v679 = vpop.permute.xlu0 %678
  %681 = vset.pattern.permute.xlu0 3
  %682 = vperm.xlu0 %681, %v23
  %v683 = vpop.permute.xlu0 %682
  %685 = vset.pattern.permute.xlu0 3
  %686 = vperm.xlu0 %685, %v24
  %v687 = vpop.permute.xlu0 %686
  %689 = vset.pattern.permute.xlu0 3
  %690 = vperm.xlu0 %689, %v25
  %v691 = vpop.permute.xlu0 %690
  %693 = vset.pattern.permute.xlu0 3
  %694 = vperm.xlu0 %693, %v26
  %v695 = vpop.permute.xlu0 %694
  %697 = vset.pattern.permute.xlu0 3
  %698 = vperm.xlu0 %697, %v27
  %v699 = vpop.permute.xlu0 %698
  %701 = vset.pattern.permute.xlu0 3
  %702 = vperm.xlu0 %701, %v28
  %v703 = vpop.permute.xlu0 %702
  %705 = vset.pattern.permute.xlu0 3
  %706 = vperm.xlu0 %705, %v29
  %v707 = vpop.permute.xlu0 %706
  %709 = vset.pattern.permute.xlu0 3
  %710 = vperm.xlu0 %709, %v30
  %v711 = vpop.permute.xlu0 %710
  %713 = vset.pattern.permute.xlu0 3
  %714 = vperm.xlu0 %713, %v31
  %v715 = vpop.permute.xlu0 %714
  %717 = vset.pattern.permute.xlu0 3
  %718 = vperm.xlu0 %717, %v32
  %v719 = vpop.permute.xlu0 %718
  %721 = vset.pattern.permute.xlu0 3
  %722 = vperm.xlu0 %721, %v33
  %v723 = vpop.permute.xlu0 %722
  %725 = vset.pattern.permute.xlu0 3
  %726 = vperm.xlu0 %725, %v34
  %v727 = vpop.permute.xlu0 %726
  %729 = vset.pattern.permute.xlu0 3
  %730 = vperm.xlu0 %729, %v35
  %v731 = vpop.permute.xlu0 %730
  %733 = vset.pattern.permute.xlu0 3
  %734 = vperm.xlu0 %733, %v36
  %v735 = vpop.permute.xlu0 %734
  %737 = vset.pattern.permute.xlu0 3
  %738 = vperm.xlu0 %737, %v37
  %v739 = vpop.permute.xlu0 %738
  %741 = vset.pattern.permute.xlu0 3
  %742 = vperm.xlu0 %741, %v38
  %v743 = vpop.permute.xlu0 %742
  %745 = vset.pattern.permute.xlu0 3
  %746 = vperm.xlu0 %745, %v39
  %v747 = vpop.permute.xlu0 %746
  %749 = vset.pattern.permute.xlu0 3
  %750 = vperm.xlu0 %749, %v40
  %v751 = vpop.permute.xlu0 %750
  %753 = vset.pattern.permute.xlu0 3
  %754 = vperm.xlu0 %753, %v41
  %v755 = vpop.permute.xlu0 %754
  %757 = vset.pattern.permute.xlu0 3
  %758 = vperm.xlu0 %757, %v42
  %v759 = vpop.permute.xlu0 %758
  %761 = vset.pattern.permute.xlu0 3
  %762 = vperm.xlu0 %761, %v43
  %v763 = vpop.permute.xlu0 %762
  %765 = vset.pattern.permute.xlu0 3
  %766 = vperm.xlu0 %765, %v44
  %v767 = vpop.permute.xlu0 %766
  %769 = vset.pattern.permute.xlu0 3
  %770 = vperm.xlu0 %769, %v45
  %v771 = vpop.permute.xlu0 %770
  %773 = vset.pattern.permute.xlu0 3
  %774 = vperm.xlu0 %773, %v46
  %v775 = vpop.permute.xlu0 %774
  %777 = vset.pattern.permute.xlu0 3
  %778 = vperm.xlu0 %777, %v47
  %v779 = vpop.permute.xlu0 %778
  %781 = vset.pattern.permute.xlu0 3
  %782 = vperm.xlu0 %781, %v48
  %v783 = vpop.permute.xlu0 %782
  %785 = vset.pattern.permute.xlu0 3
  %786 = vperm.xlu0 %785, %v49
  %v787 = vpop.permute.xlu0 %786
  %789 = vset.pattern.permute.xlu0 3
  %790 = vperm.xlu0 %789, %v50
  %v791 = vpop.permute.xlu0 %790
  %793 = vset.pattern.permute.xlu0 3
  %794 = vperm.xlu0 %793, %v51
  %v795 = vpop.permute.xlu0 %794
  %v797 = vperm.slane %v53, 3
  %v798 = vmul.f32 %v671, %v797
  %v799 = vmul.f32 %v675, %v797
  %v800 = vmul.f32 %v679, %v797
  %v801 = vmul.f32 %v683, %v797
  %v802 = vmul.f32 %v687, %v797
  %v803 = vmul.f32 %v691, %v797
  %v804 = vmul.f32 %v695, %v797
  %v805 = vmul.f32 %v699, %v797
  %v806 = vmul.f32 %v703, %v797
  %v807 = vmul.f32 %v707, %v797
  %v808 = vmul.f32 %v711, %v797
  %v809 = vmul.f32 %v715, %v797
  %v810 = vmul.f32 %v719, %v797
  %v811 = vmul.f32 %v723, %v797
  %v812 = vmul.f32 %v727, %v797
  %v813 = vmul.f32 %v731, %v797
  %v814 = vmul.f32 %v735, %v797
  %v815 = vmul.f32 %v739, %v797
  %v816 = vmul.f32 %v743, %v797
  %v817 = vmul.f32 %v747, %v797
  %v818 = vmul.f32 %v751, %v797
  %v819 = vmul.f32 %v755, %v797
  %v820 = vmul.f32 %v759, %v797
  %v821 = vmul.f32 %v763, %v797
  %v822 = vmul.f32 %v767, %v797
  %v823 = vmul.f32 %v771, %v797
  %v824 = vmul.f32 %v775, %v797
  %v825 = vmul.f32 %v779, %v797
  %v826 = vmul.f32 %v783, %v797
  %v827 = vmul.f32 %v787, %v797
  %v828 = vmul.f32 %v791, %v797
  %v829 = vmul.f32 %v795, %v797
  %v830 = vadd.f32 %v637, %v798
  %v831 = vadd.f32 %v638, %v799
  %v832 = vadd.f32 %v639, %v800
  %v833 = vadd.f32 %v640, %v801
  %v834 = vadd.f32 %v641, %v802
  %v835 = vadd.f32 %v642, %v803
  %v836 = vadd.f32 %v643, %v804
  %v837 = vadd.f32 %v644, %v805
  %v838 = vadd.f32 %v645, %v806
  %v839 = vadd.f32 %v646, %v807
  %v840 = vadd.f32 %v647, %v808
  %v841 = vadd.f32 %v648, %v809
  %v842 = vadd.f32 %v649, %v810
  %v843 = vadd.f32 %v650, %v811
  %v844 = vadd.f32 %v651, %v812
  %v845 = vadd.f32 %v652, %v813
  %v846 = vadd.f32 %v653, %v814
  %v847 = vadd.f32 %v654, %v815
  %v848 = vadd.f32 %v655, %v816
  %v849 = vadd.f32 %v656, %v817
  %v850 = vadd.f32 %v657, %v818
  %v851 = vadd.f32 %v658, %v819
  %v852 = vadd.f32 %v659, %v820
  %v853 = vadd.f32 %v660, %v821
  %v854 = vadd.f32 %v661, %v822
  %v855 = vadd.f32 %v662, %v823
  %v856 = vadd.f32 %v663, %v824
  %v857 = vadd.f32 %v664, %v825
  %v858 = vadd.f32 %v665, %v826
  %v859 = vadd.f32 %v666, %v827
  %v860 = vadd.f32 %v667, %v828
  %v861 = vadd.f32 %v668, %v829
  %v862 = vmax.f32 %v830, 0.0
  %v863 = vmax.f32 %v831, 0.0
  %v864 = vmax.f32 %v832, 0.0
  %v865 = vmax.f32 %v833, 0.0
  %v866 = vmax.f32 %v834, 0.0
  %v867 = vmax.f32 %v835, 0.0
  %v868 = vmax.f32 %v836, 0.0
  %v869 = vmax.f32 %v837, 0.0
  %v870 = vmax.f32 %v838, 0.0
  %v871 = vmax.f32 %v839, 0.0
  %v872 = vmax.f32 %v840, 0.0
  %v873 = vmax.f32 %v841, 0.0
  %v874 = vmax.f32 %v842, 0.0
  %v875 = vmax.f32 %v843, 0.0
  %v876 = vmax.f32 %v844, 0.0
  %v877 = vmax.f32 %v845, 0.0
  %v878 = vmax.f32 %v846, 0.0
  %v879 = vmax.f32 %v847, 0.0
  %v880 = vmax.f32 %v848, 0.0
  %v881 = vmax.f32 %v849, 0.0
  %v882 = vmax.f32 %v850, 0.0
  %v883 = vmax.f32 %v851, 0.0
  %v884 = vmax.f32 %v852, 0.0
  %v885 = vmax.f32 %v853, 0.0
  %v886 = vmax.f32 %v854, 0.0
  %v887 = vmax.f32 %v855, 0.0
  %v888 = vmax.f32 %v856, 0.0
  %v889 = vmax.f32 %v857, 0.0
  %v890 = vmax.f32 %v858, 0.0
  %v891 = vmax.f32 %v859, 0.0
  %v892 = vmax.f32 %v860, 0.0
  %v893 = vmax.f32 %v861, 0.0
  %v894 = vpack.c.bf16 %v863, %v862
  %v895 = vpack.c.bf16 %v865, %v864
  %v896 = vpack.c.bf16 %v867, %v866
  %v897 = vpack.c.bf16 %v869, %v868
  %v898 = vpack.c.bf16 %v871, %v870
  %v899 = vpack.c.bf16 %v873, %v872
  %v900 = vpack.c.bf16 %v875, %v874
  %v901 = vpack.c.bf16 %v877, %v876
  %v902 = vpack.c.bf16 %v879, %v878
  %v903 = vpack.c.bf16 %v881, %v880
  %v904 = vpack.c.bf16 %v883, %v882
  %v905 = vpack.c.bf16 %v885, %v884
  %v906 = vpack.c.bf16 %v887, %v886
  %v907 = vpack.c.bf16 %v889, %v888
  %v908 = vpack.c.bf16 %v891, %v890
  %v909 = vpack.c.bf16 %v893, %v892
  %v910 = vld [vmem:[%s3] sm:$0xf]
  %v911 = vld [vmem:[%s3 + $0x4] sm:$0xf]
  %v912 = vld [vmem:[%s3 + $0x8] sm:$0xf]
  %v913 = vld [vmem:[%s3 + $0xc] sm:$0xf]
  %v914 = vld [vmem:[%s3 + $0x10] sm:$0xf]
  %v915 = vld [vmem:[%s3 + $0x14] sm:$0xf]
  %v916 = vld [vmem:[%s3 + $0x18] sm:$0xf]
  %v917 = vld [vmem:[%s3 + $0x1c] sm:$0xf]
  %v918 = vld [vmem:[%s3 + $0x20] sm:$0xf]
  %v919 = vld [vmem:[%s3 + $0x24] sm:$0xf]
  %v920 = vld [vmem:[%s3 + $0x28] sm:$0xf]
  %v921 = vld [vmem:[%s3 + $0x2c] sm:$0xf]
  %v922 = vld [vmem:[%s3 + $0x30] sm:$0xf]
  %v923 = vld [vmem:[%s3 + $0x34] sm:$0xf]
  %v924 = vld [vmem:[%s3 + $0x38] sm:$0xf]
  %v925 = vld [vmem:[%s3 + $0x3c] sm:$0xf]
  %v926 = vld [vmem:[%s4] sm:$0x1]
  %v928 = vperm.slane %v926, 0
  %v946 = vunpack.c.l.b16 %v910
  %v947 = vunpack.c.l.b16 %v911
  %v948 = vunpack.c.l.b16 %v912
  %v949 = vunpack.c.l.b16 %v913
  %v950 = vunpack.c.l.b16 %v914
  %v951 = vunpack.c.l.b16 %v915
  %v952 = vunpack.c.l.b16 %v916
  %v953 = vunpack.c.l.b16 %v917
  %v954 = vunpack.c.l.b16 %v918
  %v955 = vunpack.c.l.b16 %v919
  %v956 = vunpack.c.l.b16 %v920
  %v957 = vunpack.c.l.b16 %v921
  %v958 = vunpack.c.l.b16 %v922
  %v959 = vunpack.c.l.b16 %v923
  %v960 = vunpack.c.l.b16 %v924
  %v961 = vunpack.c.l.b16 %v925
  %v962 = vpack.c.b16 %v947, %v946
  %v963 = vpack.c.b16 %v949, %v948
  %v964 = vpack.c.b16 %v951, %v950
  %v965 = vpack.c.b16 %v953, %v952
  %v966 = vpack.c.b16 %v955, %v954
  %v967 = vpack.c.b16 %v957, %v956
  %v968 = vpack.c.b16 %v959, %v958
  %v969 = vpack.c.b16 %v961, %v960
  %978 = vmatpush.bf16.msra.mxu0 %v969
  %979 = vmatpush.bf16.msra.mxu0 %v968
  %980 = vmatpush.bf16.msra.mxu0 %v967
  %981 = vmatpush.bf16.msra.mxu0 %v966
  %982 = vmatpush.bf16.msra.mxu0 %v965
  %983 = vmatpush.bf16.msra.mxu0 %v964
  %984 = vmatpush.bf16.msra.mxu0 %v963
  %985 = vmatpush.bf16.msra.mxu0 %v962
  %986 = vmatmul.bf16.gmra.mxu0 %v894
  %v987 = vpop.f32.mrf.mxu0
  %v988 = vadd.f32 %v928, %v987
  %v989 = vpop.f32.mrf.mxu0
  %v990 = vadd.f32 %v928, %v989
  %991 = vmatmul.bf16.gmra.mxu0 %v895
  %v992 = vpop.f32.mrf.mxu0
  %v993 = vadd.f32 %v928, %v992
  %v994 = vpop.f32.mrf.mxu0
  %v995 = vadd.f32 %v928, %v994
  %996 = vmatmul.bf16.gmra.mxu0 %v896
  %v997 = vpop.f32.mrf.mxu0
  %v998 = vadd.f32 %v928, %v997
  %v999 = vpop.f32.mrf.mxu0
  %v1000 = vadd.f32 %v928, %v999
  %1001 = vmatmul.bf16.gmra.mxu0 %v897
  %v1002 = vpop.f32.mrf.mxu0
  %v1003 = vadd.f32 %v928, %v1002
  %v1004 = vpop.f32.mrf.mxu0
  %v1005 = vadd.f32 %v928, %v1004
  %1006 = vmatmul.bf16.gmra.mxu0 %v898
  %v1007 = vpop.f32.mrf.mxu0
  %v1008 = vadd.f32 %v928, %v1007
  %v1009 = vpop.f32.mrf.mxu0
  %v1010 = vadd.f32 %v928, %v1009
  %1011 = vmatmul.bf16.gmra.mxu0 %v899
  %v1012 = vpop.f32.mrf.mxu0
  %v1013 = vadd.f32 %v928, %v1012
  %v1014 = vpop.f32.mrf.mxu0
  %v1015 = vadd.f32 %v928, %v1014
  %1016 = vmatmul.bf16.gmra.mxu0 %v900
  %v1017 = vpop.f32.mrf.mxu0
  %v1018 = vadd.f32 %v928, %v1017
  %v1019 = vpop.f32.mrf.mxu0
  %v1020 = vadd.f32 %v928, %v1019
  %1021 = vmatmul.bf16.gmra.mxu0 %v901
  %v1022 = vpop.f32.mrf.mxu0
  %v1023 = vadd.f32 %v928, %v1022
  %v1024 = vpop.f32.mrf.mxu0
  %v1025 = vadd.f32 %v928, %v1024
  %1026 = vmatmul.bf16.gmra.mxu0 %v902
  %v1027 = vpop.f32.mrf.mxu0
  %v1028 = vadd.f32 %v928, %v1027
  %v1029 = vpop.f32.mrf.mxu0
  %v1030 = vadd.f32 %v928, %v1029
  %1031 = vmatmul.bf16.gmra.mxu0 %v903
  %v1032 = vpop.f32.mrf.mxu0
  %v1033 = vadd.f32 %v928, %v1032
  %v1034 = vpop.f32.mrf.mxu0
  %v1035 = vadd.f32 %v928, %v1034
  %1036 = vmatmul.bf16.gmra.mxu0 %v904
  %v1037 = vpop.f32.mrf.mxu0
  %v1038 = vadd.f32 %v928, %v1037
  %v1039 = vpop.f32.mrf.mxu0
  %v1040 = vadd.f32 %v928, %v1039
  %1041 = vmatmul.bf16.gmra.mxu0 %v905
  %v1042 = vpop.f32.mrf.mxu0
  %v1043 = vadd.f32 %v928, %v1042
  %v1044 = vpop.f32.mrf.mxu0
  %v1045 = vadd.f32 %v928, %v1044
  %1046 = vmatmul.bf16.gmra.mxu0 %v906
  %v1047 = vpop.f32.mrf.mxu0
  %v1048 = vadd.f32 %v928, %v1047
  %v1049 = vpop.f32.mrf.mxu0
  %v1050 = vadd.f32 %v928, %v1049
  %1051 = vmatmul.bf16.gmra.mxu0 %v907
  %v1052 = vpop.f32.mrf.mxu0
  %v1053 = vadd.f32 %v928, %v1052
  %v1054 = vpop.f32.mrf.mxu0
  %v1055 = vadd.f32 %v928, %v1054
  %1056 = vmatmul.bf16.gmra.mxu0 %v908
  %v1057 = vpop.f32.mrf.mxu0
  %v1058 = vadd.f32 %v928, %v1057
  %v1059 = vpop.f32.mrf.mxu0
  %v1060 = vadd.f32 %v928, %v1059
  %1061 = vmatmul.bf16.gmra.mxu0 %v909
  %v1062 = vpop.f32.mrf.mxu0
  %v1063 = vadd.f32 %v928, %v1062
  %v1064 = vpop.f32.mrf.mxu0
  %v1065 = vadd.f32 %v928, %v1064
  %1066 = vdwg.mxu0
  %v1067 = vmax.f32 %v988, 0.0
  %v1068 = vmax.f32 %v990, 0.0
  %v1069 = vmax.f32 %v993, 0.0
  %v1070 = vmax.f32 %v995, 0.0
  %v1071 = vmax.f32 %v998, 0.0
  %v1072 = vmax.f32 %v1000, 0.0
  %v1073 = vmax.f32 %v1003, 0.0
  %v1074 = vmax.f32 %v1005, 0.0
  %v1075 = vmax.f32 %v1008, 0.0
  %v1076 = vmax.f32 %v1010, 0.0
  %v1077 = vmax.f32 %v1013, 0.0
  %v1078 = vmax.f32 %v1015, 0.0
  %v1079 = vmax.f32 %v1018, 0.0
  %v1080 = vmax.f32 %v1020, 0.0
  %v1081 = vmax.f32 %v1023, 0.0
  %v1082 = vmax.f32 %v1025, 0.0
  %v1083 = vmax.f32 %v1028, 0.0
  %v1084 = vmax.f32 %v1030, 0.0
  %v1085 = vmax.f32 %v1033, 0.0
  %v1086 = vmax.f32 %v1035, 0.0
  %v1087 = vmax.f32 %v1038, 0.0
  %v1088 = vmax.f32 %v1040, 0.0
  %v1089 = vmax.f32 %v1043, 0.0
  %v1090 = vmax.f32 %v1045, 0.0
  %v1091 = vmax.f32 %v1048, 0.0
  %v1092 = vmax.f32 %v1050, 0.0
  %v1093 = vmax.f32 %v1053, 0.0
  %v1094 = vmax.f32 %v1055, 0.0
  %v1095 = vmax.f32 %v1058, 0.0
  %v1096 = vmax.f32 %v1060, 0.0
  %v1097 = vmax.f32 %v1063, 0.0
  %v1098 = vmax.f32 %v1065, 0.0
  %1099 = vst [vmem:[%s5] sm:$0xff] %v1067
  %1100 = vst [vmem:[%s5 + $0x8] sm:$0xff] %v1068
  %1101 = vst [vmem:[%s5 + $0x10] sm:$0xff] %v1069
  %1102 = vst [vmem:[%s5 + $0x18] sm:$0xff] %v1070
  %1103 = vst [vmem:[%s5 + $0x20] sm:$0xff] %v1071
  %1104 = vst [vmem:[%s5 + $0x28] sm:$0xff] %v1072
  %1105 = vst [vmem:[%s5 + $0x30] sm:$0xff] %v1073
  %1106 = vst [vmem:[%s5 + $0x38] sm:$0xff] %v1074
  %1107 = vst [vmem:[%s5 + $0x40] sm:$0xff] %v1075
  %1108 = vst [vmem:[%s5 + $0x48] sm:$0xff] %v1076
  %1109 = vst [vmem:[%s5 + $0x50] sm:$0xff] %v1077
  %1110 = vst [vmem:[%s5 + $0x58] sm:$0xff] %v1078
  %1111 = vst [vmem:[%s5 + $0x60] sm:$0xff] %v1079
  %1112 = vst [vmem:[%s5 + $0x68] sm:$0xff] %v1080
  %1113 = vst [vmem:[%s5 + $0x70] sm:$0xff] %v1081
  %1114 = vst [vmem:[%s5 + $0x78] sm:$0xff] %v1082
  %1115 = vst [vmem:[%s5 + $0x80] sm:$0xff] %v1083
  %1116 = vst [vmem:[%s5 + $0x88] sm:$0xff] %v1084
  %1117 = vst [vmem:[%s5 + $0x90] sm:$0xff] %v1085
  %1118 = vst [vmem:[%s5 + $0x98] sm:$0xff] %v1086
  %1119 = vst [vmem:[%s5 + $0xa0] sm:$0xff] %v1087
  %1120 = vst [vmem:[%s5 + $0xa8] sm:$0xff] %v1088
  %1121 = vst [vmem:[%s5 + $0xb0] sm:$0xff] %v1089
  %1122 = vst [vmem:[%s5 + $0xb8] sm:$0xff] %v1090
  %1123 = vst [vmem:[%s5 + $0xc0] sm:$0xff] %v1091
  %1124 = vst [vmem:[%s5 + $0xc8] sm:$0xff] %v1092
  %1125 = vst [vmem:[%s5 + $0xd0] sm:$0xff] %v1093
  %1126 = vst [vmem:[%s5 + $0xd8] sm:$0xff] %v1094
  %1127 = vst [vmem:[%s5 + $0xe0] sm:$0xff] %v1095
  %1128 = vst [vmem:[%s5 + $0xe8] sm:$0xff] %v1096
  %1129 = vst [vmem:[%s5 + $0xf0] sm:$0xff] %v1097
  %1130 = vst [vmem:[%s5 + $0xf8] sm:$0xff] %v1098
  // Predicated region
  $region22: #{_lambda_.1} parent=0 // pred_check
    _
  $region23: #{_lambda_.1} parent=0 // pred_check_branch
    %1132 = sbr.rel (0) target = $region25
  $region24: #{_lambda_.1} parent=0 // pred_region
    _
  $region25: #{_lambda_.1} parent=0 // pred_fallthru
    _
  // Predicated region
  $region26: #{_lambda_.1} parent=0 // pred_check
    _
  $region27: #{_lambda_.1} parent=0 // pred_check_branch
    %1134 = sbr.rel (0) target = $region29
  $region28: #{_lambda_.1} parent=0 // pred_region
    _
  $region29: #{_lambda_.1} parent=0 // pred_fallthru
    _

</llo_original>
